<compile_context>
chip_gen: v7x
topology: tpu7x:2x2x1
jax: 0.10.0
libtpu: 0.0.40
codegen_flags: <defaults>
</compile_context>

<pallas_src>
import functools

import jax
import jax.numpy as jnp
from jax.experimental import pallas as pl
from jax.experimental.pallas import tpu as pltpu


# ----------------------------------------------------------------------------
# Kernel
# ----------------------------------------------------------------------------
def sf_forward_kernel(s_ref, a_ref, w1s_ref, w1a_ref, b1_ref, w2_ref, b2_ref,
                      w3_ref, b3_ref, task_ref, q_ref, sf_ref):
    """Fused MLP (state_dim+action_dim -> 128(120) -> 128(84) -> sf_dim) + task dot.

    s_ref    : (TILE_B, state_dim)       f32
    a_ref    : (TILE_B, action_dim)      f32
    w1s_ref  : (state_dim, H1)           bf16 (padded, transposed)
    w1a_ref  : (action_dim, H1)          bf16
    b1_ref   : (1, H1)                   f32
    w2_ref   : (H1, H2)                  bf16
    b2_ref   : (1, H2)                   f32
    w3_ref   : (H2, sf_dim)              bf16
    b3_ref   : (1, sf_dim)               f32
    task_ref : (sf_dim, 1)               f32
    q_ref    : (TILE_B, 1)               f32
    sf_ref   : (TILE_B, sf_dim)          f32
    """
    mm_dtype = w1s_ref.dtype

    s = s_ref[...]
    a = a_ref[...]

    # Layer 1: split matmul replaces torch.cat([state, action]) @ W1.T
    h1 = (jnp.dot(s.astype(mm_dtype), w1s_ref[...],
                  preferred_element_type=jnp.float32)
          + jnp.dot(a.astype(mm_dtype), w1a_ref[...],
                    preferred_element_type=jnp.float32)
          + b1_ref[...])
    h1 = jnp.maximum(h1, 0.0)                     # relu(l1(x)), f32 on VPU

    # Layer 2
    h2 = jnp.dot(h1.astype(mm_dtype), w2_ref[...],
                 preferred_element_type=jnp.float32) + b2_ref[...]
    h2 = jnp.maximum(h2, 0.0)                     # relu(l2(x))

    # Layer 3 (raw successor features == sf_vector())
    sf = jnp.dot(h2.astype(mm_dtype), w3_ref[...],
                 preferred_element_type=jnp.float32) + b3_ref[...]
    sf_ref[...] = sf

    # q_pred = einsum('bi,bi->b', task, sf)  ->  (TILE_B, 1) via MXU
    q_ref[...] = jnp.dot(sf, task_ref[...], preferred_element_type=jnp.float32)


# ----------------------------------------------------------------------------
# Parameter / task preparation (one-time, not per forward call)
# ----------------------------------------------------------------------------
def init_sf_params(key, state_dim, action_dim, sf_dim=32):
    """Deterministic init matching nn.Linear default (U[-1/sqrt(in), 1/sqrt(in)]).

    Returns PyTorch-layout params: (w1 (120,in), b1, w2 (84,120), b2, w3 (sf,84), b3).
    """
    input_dim = state_dim + action_dim
    dims = [(120, input_dim), (84, 120), (sf_dim, 84)]
    params = []
    for (out_d, in_d) in dims:
        key, kw, kb = jax.random.split(key, 3)
        bound = 1.0 / jnp.sqrt(in_d)
        w = jax.random.uniform(kw, (out_d, in_d), jnp.float32, -bound, bound)
        b = jax.random.uniform(kb, (out_d,), jnp.float32, -bound, bound)
        params += [w, b]
    return tuple(params)


def prepare_sf_params(params, state_dim, action_dim, *, mm_dtype=jnp.bfloat16,
                      h1_pad=128, h2_pad=128):
    """Transpose to (in, out), zero-pad hidden widths to 128, split W1, cast weights."""
    w1, b1, w2, b2, w3, b3 = params
    h1, h2, sf_dim = w1.shape[0], w2.shape[0], w3.shape[0]

    w1_t = w1.T.astype(jnp.float32)                       # (in, 120)
    w1s = jnp.zeros((state_dim, h1_pad), jnp.float32).at[:, :h1].set(w1_t[:state_dim])
    w1a = jnp.zeros((action_dim, h1_pad), jnp.float32).at[:, :h1].set(w1_t[state_dim:])
    b1p = jnp.zeros((1, h1_pad), jnp.float32).at[0, :h1].set(b1)

    w2p = jnp.zeros((h1_pad, h2_pad), jnp.float32).at[:h1, :h2].set(w2.T)
    b2p = jnp.zeros((1, h2_pad), jnp.float32).at[0, :h2].set(b2)

    w3p = jnp.zeros((h2_pad, sf_dim), jnp.float32).at[:h2, :].set(w3.T)
    b3p = b3[None, :].astype(jnp.float32)

    return {
        "w1s": w1s.astype(mm_dtype),
        "w1a": w1a.astype(mm_dtype),
        "b1": b1p,
        "w2": w2p.astype(mm_dtype),
        "b2": b2p,
        "w3": w3p.astype(mm_dtype),
        "b3": b3p,
    }


def prepare_sf_task(task):
    """Task vector as an (sf_dim, 1) f32 column so q = sf @ task runs on the MXU."""
    return task.astype(jnp.float32)[:, None]


def _round_up(x, m):
    return (x + m - 1) // m * m


# ----------------------------------------------------------------------------
# Forward wrapper
# ----------------------------------------------------------------------------
def sf_network_forward(state, action, task_col, prepped, *, max_tile_b=512):
    """Equivalent of SFNetwork.forward (q_pred) + sf_vector (raw SF)."""
    B, state_dim = state.shape
    action_dim = action.shape[1]
    sf_dim = prepped["w3"].shape[1]
    h1_pad = prepped["w1s"].shape[1]
    h2_pad = prepped["w2"].shape[1]

    state = state.astype(jnp.float32)
    action = action.astype(jnp.float32)

    # Batch tiling: tile must be a multiple of 8; pad the tail tile with zeros.
    tile_b = min(max_tile_b, _round_up(B, 8))
    b_pad = _round_up(B, tile_b)
    if b_pad != B:
        pad = b_pad - B
        state = jnp.pad(state, ((0, pad), (0, 0)))
        action = jnp.pad(action, ((0, pad), (0, 0)))
    grid = (b_pad // tile_b,)

    flops = 2 * b_pad * (state_dim * h1_pad + action_dim * h1_pad
                         + h1_pad * h2_pad + h2_pad * sf_dim + sf_dim)
    bytes_params = int(sum(v.size * v.dtype.itemsize for v in prepped.values())
                       + task_col.size * 4)
    bytes_io = b_pad * (state_dim + action_dim + sf_dim + 1) * 4
    cost = pl.CostEstimate(flops=flops, transcendentals=0,
                           bytes_accessed=bytes_params + bytes_io)

    batch_map = lambda i: (i, 0)     # tiled over batch
    const_map = lambda i: (0, 0)     # VMEM-resident across all grid steps

    grid_spec = pltpu.PrefetchScalarGridSpec(
        num_scalar_prefetch=0,
        grid=grid,
        in_specs=[
            pl.BlockSpec((tile_b, state_dim), batch_map),
            pl.BlockSpec((tile_b, action_dim), batch_map),
            pl.BlockSpec(prepped["w1s"].shape, const_map),
            pl.BlockSpec(prepped["w1a"].shape, const_map),
            pl.BlockSpec(prepped["b1"].shape, const_map),
            pl.BlockSpec(prepped["w2"].shape, const_map),
            pl.BlockSpec(prepped["b2"].shape, const_map),
            pl.BlockSpec(prepped["w3"].shape, const_map),
            pl.BlockSpec(prepped["b3"].shape, const_map),
            pl.BlockSpec(task_col.shape, const_map),
        ],
        out_specs=(
            pl.BlockSpec((tile_b, 1), batch_map),
            pl.BlockSpec((tile_b, sf_dim), batch_map),
        ),
    )

    q, sf = pl.pallas_call(
        sf_forward_kernel,
        out_shape=(
            jax.ShapeDtypeStruct((b_pad, 1), jnp.float32),
            jax.ShapeDtypeStruct((b_pad, sf_dim), jnp.float32),
        ),
        grid_spec=grid_spec,
        compiler_params=pltpu.CompilerParams(
            dimension_semantics=("parallel",)),   # megacore-shards batch tiles on v7x
        cost_estimate=cost,
    )(state, action,
      prepped["w1s"], prepped["w1a"], prepped["b1"],
      prepped["w2"], prepped["b2"],
      prepped["w3"], prepped["b3"],
      task_col)

    return q[:B, 0], sf[:B]


# ----------------------------------------------------------------------------
# Pure-JAX references
# ----------------------------------------------------------------------------
def sf_network_forward_ref(state, action, task, params):
    """Exact f32 mirror of the PyTorch module."""
    w1, b1, w2, b2, w3, b3 = params
    x = jnp.concatenate([state, action], axis=-1)
    x = jax.nn.relu(x @ w1.T + b1)
    x = jax.nn.relu(x @ w2.T + b2)
    x = x @ w3.T + b3
    t = jnp.broadcast_to(task[None, :], x.shape)
    return jnp.einsum('bi,bi->b', t, x), x


def sf_network_forward_policy_ref(state, action, task, params, mm_dtype):
    """Mirror of the kernel's dtype policy: bf16 matmul inputs, f32 accumulate/elementwise."""
    w1, b1, w2, b2, w3, b3 = params

    def mm(a, w):
        return jax.lax.dot_general(a.astype(mm_dtype), w.T.astype(mm_dtype),
                                   (((1,), (0,)), ((), ())),
                                   preferred_element_type=jnp.float32)

    x = jnp.concatenate([state, action], axis=-1)
    h1 = jax.nn.relu(mm(x, w1) + b1)
    h2 = jax.nn.relu(mm(h1, w2) + b2)
    sf = mm(h2, w3) + b3
    q = sf @ task.astype(jnp.float32)
    return q, sf


# ----------------------------------------------------------------------------
# Main
# ----------------------------------------------------------------------------
if __name__ == "__main__":
    key = jax.random.PRNGKey(0)
    state_dim, action_dim, sf_dim = 12, 4, 32
    mm_dtype = jnp.bfloat16

    k_params, k_data, k_task = jax.random.split(key, 3)
    params = init_sf_params(k_params, state_dim, action_dim, sf_dim)
    prepped = prepare_sf_params(params, state_dim, action_dim, mm_dtype=mm_dtype)

    task = jax.random.normal(k_task, (sf_dim,), jnp.float32)
    task_col = prepare_sf_task(task)

    # batch=8 exercises the aligned path; batch=5 exercises the padded tail tile.
    for batch in (8, 5):
        ks, ka = jax.random.split(jax.random.fold_in(k_data, batch))
        state = jax.random.normal(ks, (batch, state_dim), jnp.float32)
        action = jax.random.normal(ka, (batch, action_dim), jnp.float32)

        q_pred, sf_vec = sf_network_forward(state, action, task_col, prepped)
        jax.block_until_ready((q_pred, sf_vec))

        assert q_pred.shape == (batch,)
        assert sf_vec.shape == (batch, sf_dim)

        # Tight check against a reference that uses the same bf16-matmul policy.
        q_p, sf_p = sf_network_forward_policy_ref(state, action, task, params, mm_dtype)
        assert jnp.allclose(q_pred, q_p, atol=1e-3, rtol=1e-3), "q vs policy ref mismatch"
        assert jnp.allclose(sf_vec, sf_p, atol=1e-3, rtol=1e-3), "sf vs policy ref mismatch"

        # Loose check against the exact f32 PyTorch-equivalent reference
        # (difference is purely the bf16 MXU-input cast).
        q_f, sf_f = sf_network_forward_ref(state, action, task, params)
        assert jnp.allclose(q_pred, q_f, atol=3e-1, rtol=1e-1), "q vs f32 ref mismatch"
        assert jnp.allclose(sf_vec, sf_f, atol=1e-1, rtol=1e-1), "sf vs f32 ref mismatch"

    print("KERNEL_OK")
</pallas_src>

<mosaic_0001>
module attributes {stable_mosaic.version = 11 : i64} {
  func.func @sf_forward_kernel(%arg0: i32, %arg1: memref<8x12xf32, #tpu.memory_space<vmem>>, %arg2: memref<8x4xf32, #tpu.memory_space<vmem>>, %arg3: memref<12x128xbf16, #tpu.memory_space<vmem>>, %arg4: memref<4x128xbf16, #tpu.memory_space<vmem>>, %arg5: memref<1x128xf32, #tpu.memory_space<vmem>>, %arg6: memref<128x128xbf16, #tpu.memory_space<vmem>>, %arg7: memref<1x128xf32, #tpu.memory_space<vmem>>, %arg8: memref<128x32xbf16, #tpu.memory_space<vmem>>, %arg9: memref<1x32xf32, #tpu.memory_space<vmem>>, %arg10: memref<32x1xf32, #tpu.memory_space<vmem>>, %arg11: memref<8x1xf32, #tpu.memory_space<vmem>>, %arg12: memref<8x32xf32, #tpu.memory_space<vmem>>) attributes {dimension_semantics = [#tpu.dimension_semantics<parallel>], iteration_bounds = array<i64: 1>, scalar_prefetch = 0 : i64, scratch_operands = 0 : i64, tpu.core_type = #tpu.core_type<tc>, window_params = [{transform_indices = @transform_0, window_bounds = array<i64: 8, 12>}, {transform_indices = @transform_1, window_bounds = array<i64: 8, 4>}, {pipeline_mode = #tpu.pipeline_mode<synchronous>, transform_indices = @transform_2, window_bounds = array<i64: 12, 128>}, {pipeline_mode = #tpu.pipeline_mode<synchronous>, transform_indices = @transform_3, window_bounds = array<i64: 4, 128>}, {pipeline_mode = #tpu.pipeline_mode<synchronous>, transform_indices = @transform_4, window_bounds = array<i64: 1, 128>}, {pipeline_mode = #tpu.pipeline_mode<synchronous>, transform_indices = @transform_5, window_bounds = array<i64: 128, 128>}, {pipeline_mode = #tpu.pipeline_mode<synchronous>, transform_indices = @transform_6, window_bounds = array<i64: 1, 128>}, {pipeline_mode = #tpu.pipeline_mode<synchronous>, transform_indices = @transform_7, window_bounds = array<i64: 128, 32>}, {pipeline_mode = #tpu.pipeline_mode<synchronous>, transform_indices = @transform_8, window_bounds = array<i64: 1, 32>}, {pipeline_mode = #tpu.pipeline_mode<synchronous>, transform_indices = @transform_9, window_bounds = array<i64: 32, 1>}, {transform_indices = @transform_10, window_bounds = array<i64: 8, 1>}, {transform_indices = @transform_11, window_bounds = array<i64: 8, 32>}]} {
    %c0 = arith.constant 0 : index
    %c0_0 = arith.constant 0 : index
    %0 = vector.load %arg1[%c0, %c0_0] : memref<8x12xf32, #tpu.memory_space<vmem>>, vector<8x12xf32>
    %c0_1 = arith.constant 0 : index
    %c0_2 = arith.constant 0 : index
    %1 = vector.load %arg2[%c0_1, %c0_2] : memref<8x4xf32, #tpu.memory_space<vmem>>, vector<8x4xf32>
    %2 = arith.truncf %0 : vector<8x12xf32> to vector<8x12xbf16>
    %c0_3 = arith.constant 0 : index
    %c0_4 = arith.constant 0 : index
    %3 = vector.load %arg3[%c0_3, %c0_4] : memref<12x128xbf16, #tpu.memory_space<vmem>>, vector<12x128xbf16>
    %cst = arith.constant dense<0.000000e+00> : vector<8x128xf32>
    %4 = tpu.matmul %2, %3, %cst {dimension_numbers = #tpu.dot_dimension_numbers<[1], [0], [0], [1], [0, 0, 1, 1], [], []>} : vector<8x12xbf16>, vector<12x128xbf16>, vector<8x128xf32> -> vector<8x128xf32>
    %5 = arith.truncf %1 : vector<8x4xf32> to vector<8x4xbf16>
    %c0_5 = arith.constant 0 : index
    %c0_6 = arith.constant 0 : index
    %6 = vector.load %arg4[%c0_5, %c0_6] : memref<4x128xbf16, #tpu.memory_space<vmem>>, vector<4x128xbf16>
    %cst_7 = arith.constant dense<0.000000e+00> : vector<8x128xf32>
    %7 = tpu.matmul %5, %6, %cst_7 {dimension_numbers = #tpu.dot_dimension_numbers<[1], [0], [0], [1], [0, 0, 1, 1], [], []>} : vector<8x4xbf16>, vector<4x128xbf16>, vector<8x128xf32> -> vector<8x128xf32>
    %8 = arith.addf %4, %7 : vector<8x128xf32>
    %c0_8 = arith.constant 0 : index
    %c0_9 = arith.constant 0 : index
    %9 = vector.load %arg5[%c0_8, %c0_9] : memref<1x128xf32, #tpu.memory_space<vmem>>, vector<1x128xf32>
    %10 = vector.broadcast %9 : vector<1x128xf32> to vector<8x128xf32>
    %11 = arith.addf %8, %10 : vector<8x128xf32>
    %cst_10 = arith.constant 0.000000e+00 : f32
    %12 = vector.broadcast %cst_10 : f32 to vector<8x128xf32>
    %13 = arith.maximumf %11, %12 : vector<8x128xf32>
    %14 = arith.truncf %13 : vector<8x128xf32> to vector<8x128xbf16>
    %c0_11 = arith.constant 0 : index
    %c0_12 = arith.constant 0 : index
    %15 = vector.load %arg6[%c0_11, %c0_12] : memref<128x128xbf16, #tpu.memory_space<vmem>>, vector<128x128xbf16>
    %cst_13 = arith.constant dense<0.000000e+00> : vector<8x128xf32>
    %16 = tpu.matmul %14, %15, %cst_13 {dimension_numbers = #tpu.dot_dimension_numbers<[1], [0], [0], [1], [0, 0, 1, 1], [], []>} : vector<8x128xbf16>, vector<128x128xbf16>, vector<8x128xf32> -> vector<8x128xf32>
    %c0_14 = arith.constant 0 : index
    %c0_15 = arith.constant 0 : index
    %17 = vector.load %arg7[%c0_14, %c0_15] : memref<1x128xf32, #tpu.memory_space<vmem>>, vector<1x128xf32>
    %18 = vector.broadcast %17 : vector<1x128xf32> to vector<8x128xf32>
    %19 = arith.addf %16, %18 : vector<8x128xf32>
    %cst_16 = arith.constant 0.000000e+00 : f32
    %20 = vector.broadcast %cst_16 : f32 to vector<8x128xf32>
    %21 = arith.maximumf %19, %20 : vector<8x128xf32>
    %22 = arith.truncf %21 : vector<8x128xf32> to vector<8x128xbf16>
    %c0_17 = arith.constant 0 : index
    %c0_18 = arith.constant 0 : index
    %23 = vector.load %arg8[%c0_17, %c0_18] : memref<128x32xbf16, #tpu.memory_space<vmem>>, vector<128x32xbf16>
    %cst_19 = arith.constant dense<0.000000e+00> : vector<8x32xf32>
    %24 = tpu.matmul %22, %23, %cst_19 {dimension_numbers = #tpu.dot_dimension_numbers<[1], [0], [0], [1], [0, 0, 1, 1], [], []>} : vector<8x128xbf16>, vector<128x32xbf16>, vector<8x32xf32> -> vector<8x32xf32>
    %c0_20 = arith.constant 0 : index
    %c0_21 = arith.constant 0 : index
    %25 = vector.load %arg9[%c0_20, %c0_21] : memref<1x32xf32, #tpu.memory_space<vmem>>, vector<1x32xf32>
    %26 = vector.broadcast %25 : vector<1x32xf32> to vector<8x32xf32>
    %27 = arith.addf %24, %26 : vector<8x32xf32>
    %c0_22 = arith.constant 0 : index
    %c0_23 = arith.constant 0 : index
    %28 = vector.load %arg12[%c0_22, %c0_23] : memref<8x32xf32, #tpu.memory_space<vmem>>, vector<8x32xf32>
    tpu.vector_store %arg12[%c0_22, %c0_23], %27 {strides = array<i32>} : memref<8x32xf32, #tpu.memory_space<vmem>>, vector<8x32xf32>,
    %c0_24 = arith.constant 0 : index
    %c0_25 = arith.constant 0 : index
    %29 = vector.load %arg10[%c0_24, %c0_25] : memref<32x1xf32, #tpu.memory_space<vmem>>, vector<32x1xf32>
    %cst_26 = arith.constant dense<0.000000e+00> : vector<8x1xf32>
    %30 = tpu.matmul %27, %29, %cst_26 {dimension_numbers = #tpu.dot_dimension_numbers<[1], [0], [0], [1], [0, 0, 1, 1], [], []>} : vector<8x32xf32>, vector<32x1xf32>, vector<8x1xf32> -> vector<8x1xf32>
    %c0_27 = arith.constant 0 : index
    %c0_28 = arith.constant 0 : index
    %31 = vector.load %arg11[%c0_27, %c0_28] : memref<8x1xf32, #tpu.memory_space<vmem>>, vector<8x1xf32>
    tpu.vector_store %arg11[%c0_27, %c0_28], %30 {strides = array<i32>} : memref<8x1xf32, #tpu.memory_space<vmem>>, vector<8x1xf32>,
    return
  }
  func.func @transform_0(%arg0: i32) -> (i32, i32) {
    %c0_i32 = arith.constant 0 : i32
    %c0_i32_0 = arith.constant 0 : i32
    return %arg0, %c0_i32 : i32, i32
  }
  func.func @transform_1(%arg0: i32) -> (i32, i32) {
    %c0_i32 = arith.constant 0 : i32
    %c0_i32_0 = arith.constant 0 : i32
    return %arg0, %c0_i32 : i32, i32
  }
  func.func @transform_2(%arg0: i32) -> (i32, i32) {
    %c0_i32 = arith.constant 0 : i32
    %c0_i32_0 = arith.constant 0 : i32
    %c0_i32_1 = arith.constant 0 : i32
    return %c0_i32, %c0_i32_0 : i32, i32
  }
  func.func @transform_3(%arg0: i32) -> (i32, i32) {
    %c0_i32 = arith.constant 0 : i32
    %c0_i32_0 = arith.constant 0 : i32
    %c0_i32_1 = arith.constant 0 : i32
    return %c0_i32, %c0_i32_0 : i32, i32
  }
  func.func @transform_4(%arg0: i32) -> (i32, i32) {
    %c0_i32 = arith.constant 0 : i32
    %c0_i32_0 = arith.constant 0 : i32
    %c0_i32_1 = arith.constant 0 : i32
    return %c0_i32, %c0_i32_0 : i32, i32
  }
  func.func @transform_5(%arg0: i32) -> (i32, i32) {
    %c0_i32 = arith.constant 0 : i32
    %c0_i32_0 = arith.constant 0 : i32
    %c0_i32_1 = arith.constant 0 : i32
    return %c0_i32, %c0_i32_0 : i32, i32
  }
  func.func @transform_6(%arg0: i32) -> (i32, i32) {
    %c0_i32 = arith.constant 0 : i32
    %c0_i32_0 = arith.constant 0 : i32
    %c0_i32_1 = arith.constant 0 : i32
    return %c0_i32, %c0_i32_0 : i32, i32
  }
  func.func @transform_7(%arg0: i32) -> (i32, i32) {
    %c0_i32 = arith.constant 0 : i32
    %c0_i32_0 = arith.constant 0 : i32
    %c0_i32_1 = arith.constant 0 : i32
    return %c0_i32, %c0_i32_0 : i32, i32
  }
  func.func @transform_8(%arg0: i32) -> (i32, i32) {
    %c0_i32 = arith.constant 0 : i32
    %c0_i32_0 = arith.constant 0 : i32
    %c0_i32_1 = arith.constant 0 : i32
    return %c0_i32, %c0_i32_0 : i32, i32
  }
  func.func @transform_9(%arg0: i32) -> (i32, i32) {
    %c0_i32 = arith.constant 0 : i32
    %c0_i32_0 = arith.constant 0 : i32
    %c0_i32_1 = arith.constant 0 : i32
    return %c0_i32, %c0_i32_0 : i32, i32
  }
  func.func @transform_10(%arg0: i32) -> (i32, i32) {
    %c0_i32 = arith.constant 0 : i32
    %c0_i32_0 = arith.constant 0 : i32
    return %arg0, %c0_i32 : i32, i32
  }
  func.func @transform_11(%arg0: i32) -> (i32, i32) {
    %c0_i32 = arith.constant 0 : i32
    %c0_i32_0 = arith.constant 0 : i32
    return %arg0, %c0_i32 : i32, i32
  }
}

</mosaic_0001>

<llo_original>
// kernel: tpu_custom_call.1
$region0: #{tpu_custom_call.1}
  #allocation0 [shape = 'u32[]', space=smem, size = 0x4, offset = 0x4, fixed_abs, tag = 'smem constant byte address 0x4 - core index']
  #allocation1 [shape = 'u32[144,128]{1,0:T(1,128)}', space=vmem, size = 0x12000, scoped, tag = 'internal scratch']
  %s0 = inlined_call_operand.vmem [shape: f32[8,12], index: 0, kind: input, shape index: {}]
  %s1 = inlined_call_operand.vmem [shape: f32[8,4], index: 1, kind: input, shape index: {}]
  %s2 = inlined_call_operand.vmem [shape: bf16[12,128], index: 2, kind: input, shape index: {}]
  %s3 = inlined_call_operand.vmem [shape: bf16[4,128], index: 3, kind: input, shape index: {}]
  %s4 = inlined_call_operand.vmem [shape: f32[1,128], index: 4, kind: input, shape index: {}]
  %s5 = inlined_call_operand.vmem [shape: bf16[128,128], index: 5, kind: input, shape index: {}]
  %s6 = inlined_call_operand.vmem [shape: f32[1,128], index: 6, kind: input, shape index: {}]
  %s7 = inlined_call_operand.vmem [shape: bf16[128,32], index: 7, kind: input, shape index: {}]
  %s8 = inlined_call_operand.vmem [shape: f32[1,32], index: 8, kind: input, shape index: {}]
  %s9 = inlined_call_operand.vmem [shape: f32[32,1], index: 9, kind: input, shape index: {}]
  %s10 = inlined_call_operand.vmem [shape: f32[8,1], index: 10, kind: output, shape index: {0}]
  %s11 = inlined_call_operand.hbm [shape: f32[8,32], index: 11, kind: output, shape index: {1}]
  %12 = xla_tuple %s10, %s11
  %s13 = sld [smem:[#allocation0]]
  $region58: #{tpu_custom_call.1} parent=0
    _
  %s15 = ssub.s32 1, %s13
  %s16 = scalar_select 0, %s15, %s13
  $region1: #{tpu_custom_call.1} parent=0
    #allocation2 [shape = 'u8[4096]{0}', space=vmem, size = 0x1000, scoped, tag = 'output window, operand 1, single buffered']
    #allocation3 [shape = 's32[1]{0}', space=sflag, size = 0x4, scoped, tag = 'scoped memory for tpu_custom_call.1']
    %17 = vsyncpa [#allocation3], 0
    // Predicated region
    $region2: #{tpu_custom_call.1} parent=1 // pred_check
      _
    $region3: #{tpu_custom_call.1} parent=1 // pred_check_branch
      %19 = sbr.rel (0) target = $region5
    $region4: #{tpu_custom_call.1} parent=1 // pred_region
      _
    $region5: #{tpu_custom_call.1} parent=1 // pred_fallthru
      _
    // Predicated region
    $region6: #{tpu_custom_call.1} parent=1 // pred_check
      _
    $region7: #{tpu_custom_call.1} parent=1 // pred_check_branch
      %21 = sbr.rel (0) target = $region9
    $region8: #{tpu_custom_call.1} parent=1 // pred_region
      _
    $region9: #{tpu_custom_call.1} parent=1 // pred_fallthru
      _
    // Predicated region
    $region10: #{tpu_custom_call.1} parent=1 // pred_check
      _
    $region11: #{tpu_custom_call.1} parent=1 // pred_check_branch
      %23 = sbr.rel (0) target = $region13
    $region12: #{tpu_custom_call.1} parent=1 // pred_region
      _
    $region13: #{tpu_custom_call.1} parent=1 // pred_fallthru
      _
    // Predicated region
    $region14: #{tpu_custom_call.1} parent=1 // pred_check
      _
    $region15: #{tpu_custom_call.1} parent=1 // pred_check_branch
      %25 = sbr.rel (0) target = $region17
    $region16: #{tpu_custom_call.1} parent=1 // pred_region
      _
    $region17: #{tpu_custom_call.1} parent=1 // pred_fallthru
      _
    // Predicated region
    $region18: #{tpu_custom_call.1} parent=1 // pred_check
      _
    $region19: #{tpu_custom_call.1} parent=1 // pred_check_branch
      %27 = sbr.rel (0) target = $region21
    $region20: #{tpu_custom_call.1} parent=1 // pred_region
      _
    $region21: #{tpu_custom_call.1} parent=1 // pred_fallthru
      _
    // Predicated region
    $region22: #{tpu_custom_call.1} parent=1 // pred_check
      _
    $region23: #{tpu_custom_call.1} parent=1 // pred_check_branch
      %29 = sbr.rel (0) target = $region25
    $region24: #{tpu_custom_call.1} parent=1 // pred_region
      _
    $region25: #{tpu_custom_call.1} parent=1 // pred_fallthru
      _
    // Predicated region
    $region26: #{tpu_custom_call.1} parent=1 // pred_check
      _
    $region27: #{tpu_custom_call.1} parent=1 // pred_check_branch
      %31 = sbr.rel (0) target = $region29
    $region28: #{tpu_custom_call.1} parent=1 // pred_region
      _
    $region29: #{tpu_custom_call.1} parent=1 // pred_fallthru
      _
    // Predicated region
    $region30: #{tpu_custom_call.1} parent=1 // pred_check
      _
    $region31: #{tpu_custom_call.1} parent=1 // pred_check_branch
      %33 = sbr.rel (0) target = $region33
    $region32: #{tpu_custom_call.1} parent=1 // pred_region
      _
    $region33: #{tpu_custom_call.1} parent=1 // pred_fallthru
      _
    // Predicated region
    $region34: #{tpu_custom_call.1} parent=1 // pred_check
      _
    $region35: #{tpu_custom_call.1} parent=1 // pred_check_branch
      %35 = sbr.rel (0) target = $region37
    $region36: #{tpu_custom_call.1} parent=1 // pred_region
      _
    $region37: #{tpu_custom_call.1} parent=1 // pred_fallthru
      _
    // Predicated region
    $region38: #{tpu_custom_call.1} parent=1 // pred_check
      _
    $region39: #{tpu_custom_call.1} parent=1 // pred_check_branch
      %37 = sbr.rel (0) target = $region41
    $region40: #{tpu_custom_call.1} parent=1 // pred_region
      _
    $region41: #{tpu_custom_call.1} parent=1 // pred_fallthru
      _
    %v39 = vld [vmem:[%s0] sm:$0xff]
    %v40 = vld [vmem:[%s1] sm:$0xff]
    %v41 = vpack.c.bf16 %v39, %v39
    %v42 = vld [vmem:[%s2] sm:$0xf]
    %v43 = vld [vmem:[%s2 + $0x4] sm:$0x3]
    %v44 = vpack.c.bf16 %v40, %v40
    %v45 = vld [vmem:[%s3] sm:$0x3]
    %vm46 = vcmask 31744
    %v48 = vsel %vm46, %v44, 0
    %vm50 = vcmask 1041408
    %v52 = vsel %vm50, %v45, 0
    %54 = vmatprep.subr.bf16.mxu0 0
    %55 = vmatpush1.bf16.msra.mxu0 %v52
    %56 = vmatprep.subr.bf16.mxu0 0
    %57 = vmatpush1.bf16.msra.mxu0 0
    %58 = vmatprep.subr.bf16.mxu0 0
    %59 = vmatpush1.bf16.msra.mxu0 0
    %60 = vmatprep.subr.bf16.mxu0 0
    %61 = vmatpush1.bf16.msra.mxu0 0
    %62 = vmatprep.subr.bf16.mxu0 0
    %63 = vmatpush1.bf16.msra.mxu0 0
    %64 = vmatprep.subr.bf16.mxu0 0
    %65 = vmatpush1.bf16.msra.mxu0 0
    %66 = vmatprep.subr.bf16.mxu0 0
    %67 = vmatpush1.bf16.msra.mxu0 0
    %68 = vmatprep.subr.bf16.mxu0 0
    %69 = vmatpush1.bf16.msra.mxu0 0
    %70 = vmatprep.subr.bf16.mxu0 0
    %71 = vmatpush1.bf16.msra.mxu0 0
    %72 = vmatprep.subr.bf16.mxu0 0
    %73 = vmatpush1.bf16.msra.mxu0 0
    %74 = vmatprep.subr.bf16.mxu0 0
    %75 = vmatpush1.bf16.msra.mxu0 0
    %76 = vmatprep.subr.bf16.mxu0 0
    %77 = vmatpush1.bf16.msra.mxu0 0
    %78 = vmatprep.subr.bf16.mxu0 0
    %79 = vmatpush1.bf16.msra.mxu0 0
    %80 = vmatprep.subr.bf16.mxu0 0
    %81 = vmatpush1.bf16.msra.mxu0 0
    %82 = vmatprep.subr.bf16.mxu0 0
    %83 = vmatpush1.bf16.msra.mxu0 0
    %84 = vmatprep.subr.bf16.mxu0 0
    %85 = vmatpush1.bf16.msra.mxu0 0
    %86 = vmatprep.mubr.bf16.mxu0 0
    %87 = vmatmul.mubr.bf16.gmra.mrb[0].mxu0 %v48
    %v88 = vpop.f32.mrb[0].mxu0
    %v89 = vadd.f32 0.0, %v88
    %v90 = vpop.f32.mrb[0].mxu0
    %v91 = vpop.f32.mrb[0].mxu0
    %v92 = vpop.f32.mrb[0].mxu0
    %93 = vdwg.mxu0
    %v96 = vunpack.c.l.b16 %v42
    %v97 = vunpack.c.l.b16 %v43
    %v98 = vpack.c.b16 %v97, %v96
    %vm99 = vcmask 97280
    %v101 = vsel %vm99, %v41, 0
    %vm103 = vcmask 1045504
    %v105 = vsel %vm103, %v98, 0
    %107 = vmatprep.subr.bf16.mxu0 0
    %108 = vmatpush1.bf16.msra.mxu0 %v105
    %109 = vmatprep.subr.bf16.mxu0 0
    %110 = vmatpush1.bf16.msra.mxu0 0
    %111 = vmatprep.subr.bf16.mxu0 0
    %112 = vmatpush1.bf16.msra.mxu0 0
    %113 = vmatprep.subr.bf16.mxu0 0
    %114 = vmatpush1.bf16.msra.mxu0 0
    %115 = vmatprep.subr.bf16.mxu0 0
    %116 = vmatpush1.bf16.msra.mxu0 0
    %117 = vmatprep.subr.bf16.mxu0 0
    %118 = vmatpush1.bf16.msra.mxu0 0
    %119 = vmatprep.subr.bf16.mxu0 0
    %120 = vmatpush1.bf16.msra.mxu0 0
    %121 = vmatprep.subr.bf16.mxu0 0
    %122 = vmatpush1.bf16.msra.mxu0 0
    %123 = vmatprep.subr.bf16.mxu0 0
    %124 = vmatpush1.bf16.msra.mxu0 0
    %125 = vmatprep.subr.bf16.mxu0 0
    %126 = vmatpush1.bf16.msra.mxu0 0
    %127 = vmatprep.subr.bf16.mxu0 0
    %128 = vmatpush1.bf16.msra.mxu0 0
    %129 = vmatprep.subr.bf16.mxu0 0
    %130 = vmatpush1.bf16.msra.mxu0 0
    %131 = vmatprep.subr.bf16.mxu0 0
    %132 = vmatpush1.bf16.msra.mxu0 0
    %133 = vmatprep.subr.bf16.mxu0 0
    %134 = vmatpush1.bf16.msra.mxu0 0
    %135 = vmatprep.subr.bf16.mxu0 0
    %136 = vmatpush1.bf16.msra.mxu0 0
    %137 = vmatprep.subr.bf16.mxu0 0
    %138 = vmatpush1.bf16.msra.mxu0 0
    %139 = vmatprep.mubr.bf16.mxu0 0
    %140 = vmatmul.mubr.bf16.gmra.mrb[0].mxu0 %v101
    %v141 = vpop.f32.mrb[0].mxu0
    %v142 = vadd.f32 %v89, %v141
    %v143 = vpop.f32.mrb[0].mxu0
    %v144 = vpop.f32.mrb[0].mxu0
    %v145 = vpop.f32.mrb[0].mxu0
    %146 = vdwg.mxu0
    %v147 = vld [vmem:[%s4] sm:$0x1]
    %v149 = vlaneseq
    %v150 = vshrl.u32 %v149, 7
    %v151 = vsub.s32 0, %v150
    %v152 = vrot.slane %v147, %v151
    %v154 = vadd.f32 %v142, %v152
    %v155 = vmax.f32 %v154, 0.0
    %v156 = vpack.c.bf16 %v155, %v155
    %v157 = vld [vmem:[%s5] sm:$0xf]
    %v158 = vld [vmem:[%s5 + $0x4] sm:$0xf]
    %v159 = vld [vmem:[%s5 + $0x8] sm:$0xf]
    %v160 = vld [vmem:[%s5 + $0xc] sm:$0xf]
    %v161 = vld [vmem:[%s5 + $0x10] sm:$0xf]
    %v162 = vld [vmem:[%s5 + $0x14] sm:$0xf]
    %v163 = vld [vmem:[%s5 + $0x18] sm:$0xf]
    %v164 = vld [vmem:[%s5 + $0x1c] sm:$0xf]
    %v165 = vld [vmem:[%s5 + $0x20] sm:$0xf]
    %v166 = vld [vmem:[%s5 + $0x24] sm:$0xf]
    %v167 = vld [vmem:[%s5 + $0x28] sm:$0xf]
    %v168 = vld [vmem:[%s5 + $0x2c] sm:$0xf]
    %v169 = vld [vmem:[%s5 + $0x30] sm:$0xf]
    %v170 = vld [vmem:[%s5 + $0x34] sm:$0xf]
    %v171 = vld [vmem:[%s5 + $0x38] sm:$0xf]
    %v172 = vld [vmem:[%s5 + $0x3c] sm:$0xf]
    %v173 = vld [vmem:[%s6] sm:$0x1]
    %v175 = vlaneseq
    %v176 = vshrl.u32 %v175, 7
    %v177 = vsub.s32 0, %v176
    %v178 = vrot.slane %v173, %v177
    %v196 = vunpack.c.l.b16 %v157
    %v197 = vunpack.c.l.b16 %v158
    %v198 = vunpack.c.l.b16 %v159
    %v199 = vunpack.c.l.b16 %v160
    %v200 = vunpack.c.l.b16 %v161
    %v201 = vunpack.c.l.b16 %v162
    %v202 = vunpack.c.l.b16 %v163
    %v203 = vunpack.c.l.b16 %v164
    %v204 = vunpack.c.l.b16 %v165
    %v205 = vunpack.c.l.b16 %v166
    %v206 = vunpack.c.l.b16 %v167
    %v207 = vunpack.c.l.b16 %v168
    %v208 = vunpack.c.l.b16 %v169
    %v209 = vunpack.c.l.b16 %v170
    %v210 = vunpack.c.l.b16 %v171
    %v211 = vunpack.c.l.b16 %v172
    %v212 = vpack.c.b16 %v197, %v196
    %v213 = vpack.c.b16 %v199, %v198
    %v214 = vpack.c.b16 %v201, %v200
    %v215 = vpack.c.b16 %v203, %v202
    %v216 = vpack.c.b16 %v205, %v204
    %v217 = vpack.c.b16 %v207, %v206
    %v218 = vpack.c.b16 %v209, %v208
    %v219 = vpack.c.b16 %v211, %v210
    %228 = vmatprep.subr.bf16.mxu0 0
    %229 = vmatpush1.bf16.msra.mxu0 %v212
    %230 = vmatprep.subr.bf16.mxu0 0
    %231 = vmatpush1.bf16.msra.mxu0 %v213
    %232 = vmatprep.subr.bf16.mxu0 0
    %233 = vmatpush1.bf16.msra.mxu0 %v214
    %234 = vmatprep.subr.bf16.mxu0 0
    %235 = vmatpush1.bf16.msra.mxu0 %v215
    %236 = vmatprep.subr.bf16.mxu0 0
    %237 = vmatpush1.bf16.msra.mxu0 %v216
    %238 = vmatprep.subr.bf16.mxu0 0
    %239 = vmatpush1.bf16.msra.mxu0 %v217
    %240 = vmatprep.subr.bf16.mxu0 0
    %241 = vmatpush1.bf16.msra.mxu0 %v218
    %242 = vmatprep.subr.bf16.mxu0 0
    %243 = vmatpush1.bf16.msra.mxu0 %v219
    %244 = vmatprep.subr.bf16.mxu0 0
    %245 = vmatpush1.bf16.msra.mxu0 0
    %246 = vmatprep.subr.bf16.mxu0 0
    %247 = vmatpush1.bf16.msra.mxu0 0
    %248 = vmatprep.subr.bf16.mxu0 0
    %249 = vmatpush1.bf16.msra.mxu0 0
    %250 = vmatprep.subr.bf16.mxu0 0
    %251 = vmatpush1.bf16.msra.mxu0 0
    %252 = vmatprep.subr.bf16.mxu0 0
    %253 = vmatpush1.bf16.msra.mxu0 0
    %254 = vmatprep.subr.bf16.mxu0 0
    %255 = vmatpush1.bf16.msra.mxu0 0
    %256 = vmatprep.subr.bf16.mxu0 0
    %257 = vmatpush1.bf16.msra.mxu0 0
    %258 = vmatprep.subr.bf16.mxu0 0
    %259 = vmatpush1.bf16.msra.mxu0 0
    %260 = vmatprep.mubr.bf16.mxu0 0
    %261 = vmatmul.mubr.bf16.gmra.mrb[0].mxu0 %v156
    %v262 = vpop.f32.mrb[0].mxu0
    %v263 = vadd.f32 %v178, %v262
    %v264 = vpop.f32.mrb[0].mxu0
    %v265 = vpop.f32.mrb[0].mxu0
    %v266 = vpop.f32.mrb[0].mxu0
    %267 = vdwg.mxu0
    %v268 = vmax.f32 %v263, 0.0
    %v269 = vpack.c.bf16 %v268, %v268
    %v270 = vld [vmem:[%s7] sm:$0xf]
    %v271 = vld [vmem:[%s7 + $0x4] sm:$0xf]
    %v272 = vld [vmem:[%s7 + $0x8] sm:$0xf]
    %v273 = vld [vmem:[%s7 + $0xc] sm:$0xf]
    %v274 = vld [vmem:[%s7 + $0x10] sm:$0xf]
    %v275 = vld [vmem:[%s7 + $0x14] sm:$0xf]
    %v276 = vld [vmem:[%s7 + $0x18] sm:$0xf]
    %v277 = vld [vmem:[%s7 + $0x1c] sm:$0xf]
    %v278 = vld [vmem:[%s7 + $0x20] sm:$0xf]
    %v279 = vld [vmem:[%s7 + $0x24] sm:$0xf]
    %v280 = vld [vmem:[%s7 + $0x28] sm:$0xf]
    %v281 = vld [vmem:[%s7 + $0x2c] sm:$0xf]
    %v282 = vld [vmem:[%s7 + $0x30] sm:$0xf]
    %v283 = vld [vmem:[%s7 + $0x34] sm:$0xf]
    %v284 = vld [vmem:[%s7 + $0x38] sm:$0xf]
    %v285 = vld [vmem:[%s7 + $0x3c] sm:$0xf]
    %v286 = vld [vmem:[%s8] sm:$0x1]
    %v288 = vlaneseq
    %v289 = vshrl.u32 %v288, 7
    %v290 = vsub.s32 0, %v289
    %v291 = vrot.slane %v286, %v290
    %v309 = vunpack.c.l.b16 %v270
    %v310 = vunpack.c.l.b16 %v271
    %v311 = vunpack.c.l.b16 %v272
    %v312 = vunpack.c.l.b16 %v273
    %v313 = vunpack.c.l.b16 %v274
    %v314 = vunpack.c.l.b16 %v275
    %v315 = vunpack.c.l.b16 %v276
    %v316 = vunpack.c.l.b16 %v277
    %v317 = vunpack.c.l.b16 %v278
    %v318 = vunpack.c.l.b16 %v279
    %v319 = vunpack.c.l.b16 %v280
    %v320 = vunpack.c.l.b16 %v281
    %v321 = vunpack.c.l.b16 %v282
    %v322 = vunpack.c.l.b16 %v283
    %v323 = vunpack.c.l.b16 %v284
    %v324 = vunpack.c.l.b16 %v285
    %v325 = vpack.c.b16 %v310, %v309
    %v326 = vpack.c.b16 %v312, %v311
    %v327 = vpack.c.b16 %v314, %v313
    %v328 = vpack.c.b16 %v316, %v315
    %v329 = vpack.c.b16 %v318, %v317
    %v330 = vpack.c.b16 %v320, %v319
    %v331 = vpack.c.b16 %v322, %v321
    %v332 = vpack.c.b16 %v324, %v323
    %341 = vmatprep.subr.bf16.mxu0 0
    %342 = vmatpush1.bf16.msra.mxu0 %v325
    %343 = vmatprep.subr.bf16.mxu0 0
    %344 = vmatpush1.bf16.msra.mxu0 %v326
    %345 = vmatprep.subr.bf16.mxu0 0
    %346 = vmatpush1.bf16.msra.mxu0 %v327
    %347 = vmatprep.subr.bf16.mxu0 0
    %348 = vmatpush1.bf16.msra.mxu0 %v328
    %349 = vmatprep.subr.bf16.mxu0 0
    %350 = vmatpush1.bf16.msra.mxu0 %v329
    %351 = vmatprep.subr.bf16.mxu0 0
    %352 = vmatpush1.bf16.msra.mxu0 %v330
    %353 = vmatprep.subr.bf16.mxu0 0
    %354 = vmatpush1.bf16.msra.mxu0 %v331
    %355 = vmatprep.subr.bf16.mxu0 0
    %356 = vmatpush1.bf16.msra.mxu0 %v332
    %357 = vmatprep.subr.bf16.mxu0 0
    %358 = vmatpush1.bf16.msra.mxu0 0
    %359 = vmatprep.subr.bf16.mxu0 0
    %360 = vmatpush1.bf16.msra.mxu0 0
    %361 = vmatprep.subr.bf16.mxu0 0
    %362 = vmatpush1.bf16.msra.mxu0 0
    %363 = vmatprep.subr.bf16.mxu0 0
    %364 = vmatpush1.bf16.msra.mxu0 0
    %365 = vmatprep.subr.bf16.mxu0 0
    %366 = vmatpush1.bf16.msra.mxu0 0
    %367 = vmatprep.subr.bf16.mxu0 0
    %368 = vmatpush1.bf16.msra.mxu0 0
    %369 = vmatprep.subr.bf16.mxu0 0
    %370 = vmatpush1.bf16.msra.mxu0 0
    %371 = vmatprep.subr.bf16.mxu0 0
    %372 = vmatpush1.bf16.msra.mxu0 0
    %373 = vmatprep.mubr.bf16.mxu0 0
    %374 = vmatmul.mubr.bf16.gmra.mrb[0].mxu0 %v269
    %v375 = vpop.f32.mrb[0].mxu0
    %v376 = vadd.f32 %v291, %v375
    %v377 = vpop.f32.mrb[0].mxu0
    %v378 = vpop.f32.mrb[0].mxu0
    %v379 = vpop.f32.mrb[0].mxu0
    %380 = vdwg.mxu0
    %vm381 = vcmask 261120
    %382 = vst.msk [vmem:[#allocation2] sm:$0xff] %vm381, %v376
    %v383 = vld [vmem:[%s9] sm:$0xff]
    %v384 = vld [vmem:[%s9 + $0x8] sm:$0xff]
    %v385 = vld [vmem:[%s9 + $0x10] sm:$0xff]
    %v386 = vld [vmem:[%s9 + $0x18] sm:$0xff]
    %v388 = vsel %vm381, %v376, 0
    %390 = vmatprep.subr.mxu0 0.0
    %391 = vmatpush1.msra.mxu0 %v383
    %392 = vmatprep.subr.mxu0 0.0
    %393 = vmatpush1.msra.mxu0 %v384
    %394 = vmatprep.subr.mxu0 0.0
    %395 = vmatpush1.msra.mxu0 %v385
    %396 = vmatprep.subr.mxu0 0.0
    %397 = vmatpush1.msra.mxu0 %v386
    %398 = vmatprep.subr.mxu0 0.0
    %399 = vmatpush1.msra.mxu0 0.0
    %400 = vmatprep.subr.mxu0 0.0
    %401 = vmatpush1.msra.mxu0 0.0
    %402 = vmatprep.subr.mxu0 0.0
    %403 = vmatpush1.msra.mxu0 0.0
    %404 = vmatprep.subr.mxu0 0.0
    %405 = vmatpush1.msra.mxu0 0.0
    %406 = vmatprep.subr.mxu0 0.0
    %407 = vmatpush1.msra.mxu0 0.0
    %408 = vmatprep.subr.mxu0 0.0
    %409 = vmatpush1.msra.mxu0 0.0
    %410 = vmatprep.subr.mxu0 0.0
    %411 = vmatpush1.msra.mxu0 0.0
    %412 = vmatprep.subr.mxu0 0.0
    %413 = vmatpush1.msra.mxu0 0.0
    %414 = vmatprep.subr.mxu0 0.0
    %415 = vmatpush1.msra.mxu0 0.0
    %416 = vmatprep.subr.mxu0 0.0
    %417 = vmatpush1.msra.mxu0 0.0
    %418 = vmatprep.subr.mxu0 0.0
    %419 = vmatpush1.msra.mxu0 0.0
    %420 = vmatprep.subr.mxu0 0.0
    %421 = vmatpush1.msra.mxu0 0.0
    %422 = vmatprep.subr.mxu0 0.0
    %423 = vmatpush1.msra.mxu0 0.0
    %424 = vmatprep.subr.mxu0 0.0
    %425 = vmatpush1.msra.mxu0 0.0
    %426 = vmatprep.subr.mxu0 0.0
    %427 = vmatpush1.msra.mxu0 0.0
    %428 = vmatprep.subr.mxu0 0.0
    %429 = vmatpush1.msra.mxu0 0.0
    %430 = vmatprep.subr.mxu0 0.0
    %431 = vmatpush1.msra.mxu0 0.0
    %432 = vmatprep.subr.mxu0 0.0
    %433 = vmatpush1.msra.mxu0 0.0
    %434 = vmatprep.subr.mxu0 0.0
    %435 = vmatpush1.msra.mxu0 0.0
    %436 = vmatprep.subr.mxu0 0.0
    %437 = vmatpush1.msra.mxu0 0.0
    %438 = vmatprep.subr.mxu0 0.0
    %439 = vmatpush1.msra.mxu0 0.0
    %440 = vmatprep.subr.mxu0 0.0
    %441 = vmatpush1.msra.mxu0 0.0
    %442 = vmatprep.subr.mxu0 0.0
    %443 = vmatpush1.msra.mxu0 0.0
    %444 = vmatprep.subr.mxu0 0.0
    %445 = vmatpush1.msra.mxu0 0.0
    %446 = vmatprep.subr.mxu0 0.0
    %447 = vmatpush1.msra.mxu0 0.0
    %448 = vmatprep.subr.mxu0 0.0
    %449 = vmatpush1.msra.mxu0 0.0
    %450 = vmatprep.subr.mxu0 0.0
    %451 = vmatpush1.msra.mxu0 0.0
    %452 = vmatprep.subr.mxu0 0.0
    %453 = vmatpush1.msra.mxu0 0.0
    %454 = vmatprep.mubr.f32.mxu0 0.0
    %455 = vmatmul.mubr.f32.gmra.mrb[0].mxu0 %v388
    %v456 = vpop.f32.mrb[0].mxu0
    %v457 = vadd.f32 0.0, %v456
    %v458 = vpop.f32.mrb[0].mxu0
    %459 = vdwg.mxu0
    %vm460 = vcmask 7168
    %461 = vst.msk [vmem:[%s10] sm:$0xff] %vm460, %v457
    // Predicated region
    $region42: #{tpu_custom_call.1} parent=1 // pred_check
      _
    $region43: #{tpu_custom_call.1} parent=1 // pred_check_branch
      %463 = sbr.rel (0) target = $region45
    $region44: #{tpu_custom_call.1} parent=1 // pred_region
      _
    $region45: #{tpu_custom_call.1} parent=1 // pred_fallthru
      _
    // Predicated region
    $region46: #{tpu_custom_call.1} parent=1 // pred_check
      _
    $region47: #{tpu_custom_call.1} parent=1 // pred_check_branch
      %465 = sbr.rel (0) target = $region49
    $region48: #{tpu_custom_call.1} parent=1 // pred_region
      %s467 = ssub.s32 128, 128
      %468 = vsyncadd [#allocation3], %s467
      %s470 = sshll.u32 [#allocation2], 4
      %s471 = int_to_ptr.vmem [resolvable:$true] %s470
      %473 = dma.vmem_to_hbm [thread:$0]  %s471, 128, %s11, [#allocation3]
    $region49: #{tpu_custom_call.1} parent=1 // pred_fallthru
      _
    // Predicated region
    $region50: #{tpu_custom_call.1} parent=1 // pred_check
      _
    $region51: #{tpu_custom_call.1} parent=1 // pred_check_branch
      %475 = sbr.rel (0) target = $region53
    $region52: #{tpu_custom_call.1} parent=1 // pred_region
      _
    $region53: #{tpu_custom_call.1} parent=1 // pred_fallthru
      _
    // Predicated region
    $region54: #{tpu_custom_call.1} parent=1 // pred_check
      _
    $region55: #{tpu_custom_call.1} parent=1 // pred_check_branch
      %477 = sbr.rel (0) target = $region57
    $region56: #{tpu_custom_call.1} parent=1 // pred_region
      %478 = dma.done [#allocation3], 128
    $region57: #{tpu_custom_call.1} parent=1 // pred_fallthru
      _
    %479 = vsyncpa [#allocation3], 1

</llo_original>
